<compile_context>
chip_gen: v5e
topology: v5e:2x2
jax: 0.10.0
libtpu: 0.0.40
codegen_flags: <defaults>
</compile_context>

<pallas_src>
import jax
import jax.numpy as jnp
import numpy as np
from jax.experimental import pallas as pl
from jax.experimental.pallas import tpu as pltpu


def _round_up(x, m):
    return ((x + m - 1) // m) * m


def critic_kernel(s_ref, a_ref, w1_ref, w2_ref, w3_ref, b_ref, o_ref):
    H1 = w1_ref.shape[1]
    H2 = w2_ref.shape[1]
    cdt = w1_ref.dtype  # compute dtype for the MXU operands (f32 or bf16)

    # Packed biases: one DMA, static lane slices (kept in f32 for the epilogue).
    b = b_ref[...]                       # (1, H1 + H2 + 1)
    b1 = b[:, :H1]
    b2 = b[:, H1:H1 + H2]
    b3 = b[:, H1 + H2:]                  # (1, 1)

    # fc1 + relu  (f32 MXU accumulation)
    h1 = jnp.dot(s_ref[...], w1_ref[...], preferred_element_type=jnp.float32)
    h1 = jnp.maximum(h1 + b1, 0.0)

    # fc2 over cat([h1, a], 1)  ==  h1 @ W2[:H1] + a @ W2[H1:]   (no in-kernel concat)
    w2 = w2_ref[...]
    h2 = jnp.dot(h1.astype(cdt), w2[:H1, :], preferred_element_type=jnp.float32)
    h2 = h2 + jnp.dot(a_ref[...], w2[H1:, :], preferred_element_type=jnp.float32)
    h2 = jnp.maximum(h2 + b2, 0.0)

    # fc3 (out_features == 1): VPU multiply + lane reduce instead of an N=1 matmul,
    # which would waste a full MXU push/pop for a single output lane.
    out = jnp.sum(h2 * w3_ref[...].astype(jnp.float32), axis=-1, keepdims=True) + b3
    o_ref[...] = out.astype(o_ref.dtype)


def critic_forward(s, a, params, *, block_rows=512):
    w1, w2, w3_row, b = params
    B, S = s.shape
    A = a.shape[1]
    cdt = w1.dtype

    # Cast activations to the compute dtype in the wrapper so the DMA'd bytes are
    # already halved when bf16 weights are used (v6e/v7x lever).
    s = s.astype(cdt)
    a = a.astype(cdt)

    # Batch tile: as large as reasonable (amortize ~0.35 us/step), sublane-aligned,
    # and pad B up to a multiple of the tile (padded rows are sliced off afterwards).
    TB = min(int(block_rows), _round_up(B, 8))
    Bp = _round_up(B, TB)
    if Bp != B:
        pad = Bp - B
        s = jnp.pad(s, ((0, pad), (0, 0)))
        a = jnp.pad(a, ((0, pad), (0, 0)))

    grid = (Bp // TB,)

    def act_spec(cols):
        # activation tile moves with the batch grid step
        return pl.BlockSpec((TB, cols), lambda i: (i, 0))

    def resident_spec(arr):
        # whole-array block, same block index every step -> stays resident in VMEM
        shp = arr.shape
        return pl.BlockSpec(shp, lambda i: tuple(0 for _ in shp))

    out = pl.pallas_call(
        critic_kernel,
        out_shape=jax.ShapeDtypeStruct((Bp, 1), jnp.float32),
        grid_spec=pltpu.PrefetchScalarGridSpec(
            num_scalar_prefetch=0,
            grid=grid,
            in_specs=[
                act_spec(S), act_spec(A),
                resident_spec(w1), resident_spec(w2),
                resident_spec(w3_row), resident_spec(b),
            ],
            out_specs=pl.BlockSpec((TB, 1), lambda i: (i, 0)),
        ),
        compiler_params=pltpu.CompilerParams(
            # batch axis is independent across tiles -> "parallel" (megacore on v7x)
            dimension_semantics=("parallel",)),
    )(s, a, w1, w2, w3_row, b)
    return out[:B]


def init_critic_params(key, state_size, action_size, h1_size, h2_size,
                       init_w=0.003, compute_dtype=jnp.float32):
    """Deterministic init mirroring the PyTorch module (fanin_init / uniform)."""
    k1, k2, k3, kb1, kb2, kb3 = jax.random.split(key, 6)

    # fanin_init uses size[0] of the PyTorch (out, in) weight, i.e. out_features
    # (reproducing the original code's convention exactly).
    def fanin_uniform(k, out_f, in_f):
        v = 1.0 / np.sqrt(out_f)
        # stored transposed: (in, out)
        return jax.random.uniform(k, (in_f, out_f), jnp.float32, -v, v)

    w1 = fanin_uniform(k1, h1_size, state_size)                     # (S, H1)
    w2 = fanin_uniform(k2, h2_size, h1_size + action_size)          # (H1+A, H2)
    # fc3 weight kept as a (1, H2) row -> VPU reduce in the kernel
    w3_row = jax.random.uniform(k3, (1, h2_size), jnp.float32, -init_w, init_w)

    # nn.Linear default bias init: U(-1/sqrt(fan_in), 1/sqrt(fan_in))
    def bias(k, fan_in, n):
        bnd = 1.0 / np.sqrt(fan_in)
        return jax.random.uniform(k, (1, n), jnp.float32, -bnd, bnd)

    b1 = bias(kb1, state_size, h1_size)
    b2 = bias(kb2, h1_size + action_size, h2_size)
    b3 = bias(kb3, h2_size, 1)
    # pack the three biases into a single parameter DMA (sliced statically in-kernel)
    b = jnp.concatenate([b1, b2, b3], axis=1)                        # (1, H1+H2+1)

    cdt = jnp.dtype(compute_dtype)
    return (w1.astype(cdt), w2.astype(cdt), w3_row.astype(cdt), b)


def critic_ref(s, a, params):
    """Pure-JAX reference (same math as the PyTorch forward)."""
    w1, w2, w3_row, b = params
    w1 = w1.astype(jnp.float32)
    w2 = w2.astype(jnp.float32)
    w3 = w3_row.astype(jnp.float32)
    H1, H2 = w1.shape[1], w2.shape[1]
    b1, b2, b3 = b[:, :H1], b[:, H1:H1 + H2], b[:, H1 + H2:]
    h1 = jax.nn.relu(s @ w1 + b1)
    cat = jnp.concatenate([h1, a], axis=1)
    h2 = jax.nn.relu(cat @ w2 + b2)
    return h2 @ w3.T + b3


if __name__ == "__main__":
    B, STATE, ACTION, H1, H2 = 8, 16, 8, 32, 32

    key = jax.random.PRNGKey(0)
    kp, ks, ka = jax.random.split(key, 3)

    params = init_critic_params(kp, STATE, ACTION, H1, H2)
    s = jax.random.normal(ks, (B, STATE), jnp.float32)
    a = jax.random.normal(ka, (B, ACTION), jnp.float32)

    # f32 path
    out = jax.block_until_ready(critic_forward(s, a, params))
    ref = critic_ref(s, a, params)
    np.testing.assert_allclose(np.asarray(out), np.asarray(ref), rtol=1e-5, atol=1e-5)
    assert out.shape == (B, 1)

    # ragged batch (exercises the pad-to-tile path)
    B2 = 20
    s2 = jax.random.normal(jax.random.PRNGKey(1), (B2, STATE), jnp.float32)
    a2 = jax.random.normal(jax.random.PRNGKey(2), (B2, ACTION), jnp.float32)
    out2 = jax.block_until_ready(critic_forward(s2, a2, params))
    np.testing.assert_allclose(np.asarray(out2),
                               np.asarray(critic_ref(s2, a2, params)),
                               rtol=1e-5, atol=1e-5)
    assert out2.shape == (B2, 1)

    # bf16 compute path (v6e/v7x MXU + halved activation/weight DMA bytes)
    params_bf16 = init_critic_params(kp, STATE, ACTION, H1, H2,
                                     compute_dtype=jnp.bfloat16)
    out_bf = jax.block_until_ready(critic_forward(s, a, params_bf16))
    np.testing.assert_allclose(np.asarray(out_bf), np.asarray(ref),
                               rtol=5e-2, atol=3e-2)

    print("KERNEL_OK")
</pallas_src>

<mosaic_0001>
module attributes {stable_mosaic.version = 11 : i64} {
  func.func @critic_kernel(%arg0: i32, %arg1: memref<8x16xf32, #tpu.memory_space<vmem>>, %arg2: memref<8x8xf32, #tpu.memory_space<vmem>>, %arg3: memref<16x32xf32, #tpu.memory_space<vmem>>, %arg4: memref<40x32xf32, #tpu.memory_space<vmem>>, %arg5: memref<1x32xf32, #tpu.memory_space<vmem>>, %arg6: memref<1x65xf32, #tpu.memory_space<vmem>>, %arg7: memref<8x1xf32, #tpu.memory_space<vmem>>) attributes {dimension_semantics = [#tpu.dimension_semantics<parallel>], iteration_bounds = array<i64: 1>, scalar_prefetch = 0 : i64, scratch_operands = 0 : i64, tpu.core_type = #tpu.core_type<tc>, window_params = [{transform_indices = @transform_0, window_bounds = array<i64: 8, 16>}, {transform_indices = @transform_1, window_bounds = array<i64: 8, 8>}, {pipeline_mode = #tpu.pipeline_mode<synchronous>, transform_indices = @transform_2, window_bounds = array<i64: 16, 32>}, {pipeline_mode = #tpu.pipeline_mode<synchronous>, transform_indices = @transform_3, window_bounds = array<i64: 40, 32>}, {pipeline_mode = #tpu.pipeline_mode<synchronous>, transform_indices = @transform_4, window_bounds = array<i64: 1, 32>}, {pipeline_mode = #tpu.pipeline_mode<synchronous>, transform_indices = @transform_5, window_bounds = array<i64: 1, 65>}, {transform_indices = @transform_6, window_bounds = array<i64: 8, 1>}]} {
    %c0 = arith.constant 0 : index
    %c0_0 = arith.constant 0 : index
    %0 = vector.load %arg6[%c0, %c0_0] : memref<1x65xf32, #tpu.memory_space<vmem>>, vector<1x65xf32>
    %1 = vector.extract_strided_slice %0 {offsets = [0, 0], sizes = [1, 32], strides = [1, 1]} : vector<1x65xf32> to vector<1x32xf32>
    %2 = vector.extract_strided_slice %0 {offsets = [0, 32], sizes = [1, 32], strides = [1, 1]} : vector<1x65xf32> to vector<1x32xf32>
    %3 = vector.extract_strided_slice %0 {offsets = [0, 64], sizes = [1, 1], strides = [1, 1]} : vector<1x65xf32> to vector<1x1xf32>
    %c0_1 = arith.constant 0 : index
    %c0_2 = arith.constant 0 : index
    %4 = vector.load %arg1[%c0_1, %c0_2] : memref<8x16xf32, #tpu.memory_space<vmem>>, vector<8x16xf32>
    %c0_3 = arith.constant 0 : index
    %c0_4 = arith.constant 0 : index
    %5 = vector.load %arg3[%c0_3, %c0_4] : memref<16x32xf32, #tpu.memory_space<vmem>>, vector<16x32xf32>
    %cst = arith.constant dense<0.000000e+00> : vector<8x32xf32>
    %6 = tpu.matmul %4, %5, %cst {dimension_numbers = #tpu.dot_dimension_numbers<[1], [0], [0], [1], [0, 0, 1, 1], [], []>} : vector<8x16xf32>, vector<16x32xf32>, vector<8x32xf32> -> vector<8x32xf32>
    %7 = vector.broadcast %1 : vector<1x32xf32> to vector<8x32xf32>
    %8 = arith.addf %6, %7 : vector<8x32xf32>
    %cst_5 = arith.constant 0.000000e+00 : f32
    %9 = vector.broadcast %cst_5 : f32 to vector<8x32xf32>
    %10 = arith.maximumf %8, %9 : vector<8x32xf32>
    %c0_6 = arith.constant 0 : index
    %c0_7 = arith.constant 0 : index
    %11 = vector.load %arg4[%c0_6, %c0_7] : memref<40x32xf32, #tpu.memory_space<vmem>>, vector<40x32xf32>
    %12 = vector.extract_strided_slice %11 {offsets = [0, 0], sizes = [32, 32], strides = [1, 1]} : vector<40x32xf32> to vector<32x32xf32>
    %cst_8 = arith.constant dense<0.000000e+00> : vector<8x32xf32>
    %13 = tpu.matmul %10, %12, %cst_8 {dimension_numbers = #tpu.dot_dimension_numbers<[1], [0], [0], [1], [0, 0, 1, 1], [], []>} : vector<8x32xf32>, vector<32x32xf32>, vector<8x32xf32> -> vector<8x32xf32>
    %c0_9 = arith.constant 0 : index
    %c0_10 = arith.constant 0 : index
    %14 = vector.load %arg2[%c0_9, %c0_10] : memref<8x8xf32, #tpu.memory_space<vmem>>, vector<8x8xf32>
    %15 = vector.extract_strided_slice %11 {offsets = [32, 0], sizes = [8, 32], strides = [1, 1]} : vector<40x32xf32> to vector<8x32xf32>
    %cst_11 = arith.constant dense<0.000000e+00> : vector<8x32xf32>
    %16 = tpu.matmul %14, %15, %cst_11 {dimension_numbers = #tpu.dot_dimension_numbers<[1], [0], [0], [1], [0, 0, 1, 1], [], []>} : vector<8x8xf32>, vector<8x32xf32>, vector<8x32xf32> -> vector<8x32xf32>
    %17 = arith.addf %13, %16 : vector<8x32xf32>
    %18 = vector.broadcast %2 : vector<1x32xf32> to vector<8x32xf32>
    %19 = arith.addf %17, %18 : vector<8x32xf32>
    %cst_12 = arith.constant 0.000000e+00 : f32
    %20 = vector.broadcast %cst_12 : f32 to vector<8x32xf32>
    %21 = arith.maximumf %19, %20 : vector<8x32xf32>
    %c0_13 = arith.constant 0 : index
    %c0_14 = arith.constant 0 : index
    %22 = vector.load %arg5[%c0_13, %c0_14] : memref<1x32xf32, #tpu.memory_space<vmem>>, vector<1x32xf32>
    %23 = vector.broadcast %22 : vector<1x32xf32> to vector<8x32xf32>
    %24 = arith.mulf %21, %23 : vector<8x32xf32>
    %cst_15 = arith.constant dense<0.000000e+00> : vector<8xf32>
    %25 = vector.multi_reduction <add>, %24, %cst_15 [1] : vector<8x32xf32> to vector<8xf32>
    %26 = vector.shape_cast %25 : vector<8xf32> to vector<8x1xf32>
    %27 = vector.broadcast %3 : vector<1x1xf32> to vector<8x1xf32>
    %28 = arith.addf %26, %27 : vector<8x1xf32>
    %c0_16 = arith.constant 0 : index
    %c0_17 = arith.constant 0 : index
    %29 = vector.load %arg7[%c0_16, %c0_17] : memref<8x1xf32, #tpu.memory_space<vmem>>, vector<8x1xf32>
    tpu.vector_store %arg7[%c0_16, %c0_17], %28 {strides = array<i32>} : memref<8x1xf32, #tpu.memory_space<vmem>>, vector<8x1xf32>,
    return
  }
  func.func @transform_0(%arg0: i32) -> (i32, i32) {
    %c0_i32 = arith.constant 0 : i32
    %c0_i32_0 = arith.constant 0 : i32
    return %arg0, %c0_i32 : i32, i32
  }
  func.func @transform_1(%arg0: i32) -> (i32, i32) {
    %c0_i32 = arith.constant 0 : i32
    %c0_i32_0 = arith.constant 0 : i32
    return %arg0, %c0_i32 : i32, i32
  }
  func.func @transform_2(%arg0: i32) -> (i32, i32) {
    %c0_i32 = arith.constant 0 : i32
    %c0_i32_0 = arith.constant 0 : i32
    %c0_i32_1 = arith.constant 0 : i32
    return %c0_i32, %c0_i32_0 : i32, i32
  }
  func.func @transform_3(%arg0: i32) -> (i32, i32) {
    %c0_i32 = arith.constant 0 : i32
    %c0_i32_0 = arith.constant 0 : i32
    %c0_i32_1 = arith.constant 0 : i32
    return %c0_i32, %c0_i32_0 : i32, i32
  }
  func.func @transform_4(%arg0: i32) -> (i32, i32) {
    %c0_i32 = arith.constant 0 : i32
    %c0_i32_0 = arith.constant 0 : i32
    %c0_i32_1 = arith.constant 0 : i32
    return %c0_i32, %c0_i32_0 : i32, i32
  }
  func.func @transform_5(%arg0: i32) -> (i32, i32) {
    %c0_i32 = arith.constant 0 : i32
    %c0_i32_0 = arith.constant 0 : i32
    %c0_i32_1 = arith.constant 0 : i32
    return %c0_i32, %c0_i32_0 : i32, i32
  }
  func.func @transform_6(%arg0: i32) -> (i32, i32) {
    %c0_i32 = arith.constant 0 : i32
    %c0_i32_0 = arith.constant 0 : i32
    return %arg0, %c0_i32 : i32, i32
  }
}

</mosaic_0001>

<llo_original>
// kernel: tpu_custom_call.1
$region0: #{tpu_custom_call.1}
  #allocation0 [shape = 'u32[]', space=smem, size = 0x4, offset = 0x4, fixed_abs, tag = 'smem constant byte address 0x4 - core index']
  #allocation1 [shape = 'u32[72,128]{1,0:T(1,128)}', space=vmem, size = 0x9000, scoped, tag = 'internal scratch']
  %s0 = inlined_call_operand.vmem [shape: f32[8,16], index: 0, kind: input, shape index: {}]
  %s1 = inlined_call_operand.vmem [shape: f32[8,8], index: 1, kind: input, shape index: {}]
  %s2 = inlined_call_operand.vmem [shape: f32[16,32], index: 2, kind: input, shape index: {}]
  %s3 = inlined_call_operand.vmem [shape: f32[40,32], index: 3, kind: input, shape index: {}]
  %s4 = inlined_call_operand.vmem [shape: f32[1,32], index: 4, kind: input, shape index: {}]
  %s5 = inlined_call_operand.vmem [shape: f32[1,65], index: 5, kind: input, shape index: {}]
  %s6 = inlined_call_operand.vmem [shape: f32[8,1], index: 6, kind: output, shape index: {}]
  %s7 = sld [smem:[#allocation0]]
  $region34: #{tpu_custom_call.1} parent=0
    _
  %s9 = ssub.s32 1, %s7
  %s10 = scalar_select 0, %s9, %s7
  // Predicated region
  $region2: #{tpu_custom_call.1} parent=0 // pred_check
    _
  $region3: #{tpu_custom_call.1} parent=0 // pred_check_branch
    %12 = sbr.rel (0) target = $region5
  $region4: #{tpu_custom_call.1} parent=0 // pred_region
    _
  $region5: #{tpu_custom_call.1} parent=0 // pred_fallthru
    _
  // Predicated region
  $region6: #{tpu_custom_call.1} parent=0 // pred_check
    _
  $region7: #{tpu_custom_call.1} parent=0 // pred_check_branch
    %14 = sbr.rel (0) target = $region9
  $region8: #{tpu_custom_call.1} parent=0 // pred_region
    _
  $region9: #{tpu_custom_call.1} parent=0 // pred_fallthru
    _
  // Predicated region
  $region10: #{tpu_custom_call.1} parent=0 // pred_check
    _
  $region11: #{tpu_custom_call.1} parent=0 // pred_check_branch
    %16 = sbr.rel (0) target = $region13
  $region12: #{tpu_custom_call.1} parent=0 // pred_region
    _
  $region13: #{tpu_custom_call.1} parent=0 // pred_fallthru
    _
  // Predicated region
  $region14: #{tpu_custom_call.1} parent=0 // pred_check
    _
  $region15: #{tpu_custom_call.1} parent=0 // pred_check_branch
    %18 = sbr.rel (0) target = $region17
  $region16: #{tpu_custom_call.1} parent=0 // pred_region
    _
  $region17: #{tpu_custom_call.1} parent=0 // pred_fallthru
    _
  // Predicated region
  $region18: #{tpu_custom_call.1} parent=0 // pred_check
    _
  $region19: #{tpu_custom_call.1} parent=0 // pred_check_branch
    %20 = sbr.rel (0) target = $region21
  $region20: #{tpu_custom_call.1} parent=0 // pred_region
    _
  $region21: #{tpu_custom_call.1} parent=0 // pred_fallthru
    _
  // Predicated region
  $region22: #{tpu_custom_call.1} parent=0 // pred_check
    _
  $region23: #{tpu_custom_call.1} parent=0 // pred_check_branch
    %22 = sbr.rel (0) target = $region25
  $region24: #{tpu_custom_call.1} parent=0 // pred_region
    _
  $region25: #{tpu_custom_call.1} parent=0 // pred_fallthru
    _
  %v23 = vld [vmem:[%s5] sm:$0x1]
  %v24 = vld [vmem:[%s0] sm:$0xff]
  %v25 = vld [vmem:[%s2] sm:$0xff]
  %v26 = vld [vmem:[%s2 + $0x8] sm:$0xff]
  %v28 = vperm.slane %v23, 0
  %vm30 = vcmask 130048
  %v32 = vsel %vm30, %v24, 0
  %34 = vmatpush.msra.mxu0 0.0
  %35 = vmatpush.msra.mxu0 0.0
  %36 = vmatpush.msra.mxu0 0.0
  %37 = vmatpush.msra.mxu0 0.0
  %38 = vmatpush.msra.mxu0 0.0
  %39 = vmatpush.msra.mxu0 0.0
  %40 = vmatpush.msra.mxu0 0.0
  %41 = vmatpush.msra.mxu0 0.0
  %42 = vmatpush.msra.mxu0 0.0
  %43 = vmatpush.msra.mxu0 0.0
  %44 = vmatpush.msra.mxu0 0.0
  %45 = vmatpush.msra.mxu0 0.0
  %46 = vmatpush.msra.mxu0 0.0
  %47 = vmatpush.msra.mxu0 0.0
  %48 = vmatpush.msra.mxu0 %v26
  %49 = vmatpush.msra.mxu0 %v25
  %50 = vmatmul.f32.gmra.mxu0 %v32
  %v51 = vpop.f32.mrf.mxu0
  %v52 = vadd.f32 %v28, %v51
  %53 = vdwg.mxu0
  %v54 = vmax.f32 %v52, 0.0
  %v55 = vld [vmem:[%s3] sm:$0xff]
  %v56 = vld [vmem:[%s3 + $0x8] sm:$0xff]
  %v57 = vld [vmem:[%s3 + $0x10] sm:$0xff]
  %v58 = vld [vmem:[%s3 + $0x18] sm:$0xff]
  %v59 = vld [vmem:[%s3 + $0x20] sm:$0xff]
  %v60 = vld [vmem:[%s1] sm:$0xff]
  %vm61 = vcmask 64512
  %v63 = vsel %vm61, %v60, 0
  %65 = vmatpush.msra.mxu0 0.0
  %66 = vmatpush.msra.mxu0 0.0
  %67 = vmatpush.msra.mxu0 0.0
  %68 = vmatpush.msra.mxu0 0.0
  %69 = vmatpush.msra.mxu0 0.0
  %70 = vmatpush.msra.mxu0 0.0
  %71 = vmatpush.msra.mxu0 0.0
  %72 = vmatpush.msra.mxu0 0.0
  %73 = vmatpush.msra.mxu0 0.0
  %74 = vmatpush.msra.mxu0 0.0
  %75 = vmatpush.msra.mxu0 0.0
  %76 = vmatpush.msra.mxu0 0.0
  %77 = vmatpush.msra.mxu0 0.0
  %78 = vmatpush.msra.mxu0 0.0
  %79 = vmatpush.msra.mxu0 0.0
  %80 = vmatpush.msra.mxu0 %v59
  %81 = vmatmul.f32.gmra.mxu0 %v63
  %v82 = vpop.f32.mrf.mxu0
  %v83 = vadd.f32 0.0, %v82
  %84 = vdwg.mxu0
  %vm85 = vcmask 261120
  %v87 = vsel %vm85, %v54, 0
  %89 = vmatpush.msra.mxu0 0.0
  %90 = vmatpush.msra.mxu0 0.0
  %91 = vmatpush.msra.mxu0 0.0
  %92 = vmatpush.msra.mxu0 0.0
  %93 = vmatpush.msra.mxu0 0.0
  %94 = vmatpush.msra.mxu0 0.0
  %95 = vmatpush.msra.mxu0 0.0
  %96 = vmatpush.msra.mxu0 0.0
  %97 = vmatpush.msra.mxu0 0.0
  %98 = vmatpush.msra.mxu0 0.0
  %99 = vmatpush.msra.mxu0 0.0
  %100 = vmatpush.msra.mxu0 0.0
  %101 = vmatpush.msra.mxu0 %v58
  %102 = vmatpush.msra.mxu0 %v57
  %103 = vmatpush.msra.mxu0 %v56
  %104 = vmatpush.msra.mxu0 %v55
  %105 = vmatmul.f32.gmra.mxu0 %v87
  %v106 = vpop.f32.mrf.mxu0
  %v107 = vadd.f32 %v83, %v106
  %108 = vdwg.mxu0
  %109 = vrot.lane.b32.xlu0 %v28, 96
  %v110 = vpop.permute.xlu0 %109
  %v112 = vadd.f32 %v107, %v110
  %v113 = vmax.f32 %v112, 0.0
  %v114 = vld [vmem:[%s4] sm:$0x1]
  %v116 = vperm.slane %v114, 0
  %v118 = vmul.f32 %v113, %v116
  %v119 = vsel %vm85, %v118, 0.0
  %120 = vadd.xlane.f32.xlu0 %v119
  %v121 = vpop.xlane.xlu0 %120
  %v122 = vadd.f32 %v121, %v28
  %124 = vrot.lane.b32.xlu0 %v122, 64
  %v125 = vpop.permute.xlu0 %124
  %vm127 = vcmask 7168
  %128 = vst.msk [vmem:[%s6] sm:$0xff] %vm127, %v125
  // Predicated region
  $region26: #{tpu_custom_call.1} parent=0 // pred_check
    _
  $region27: #{tpu_custom_call.1} parent=0 // pred_check_branch
    %130 = sbr.rel (0) target = $region29
  $region28: #{tpu_custom_call.1} parent=0 // pred_region
    _
  $region29: #{tpu_custom_call.1} parent=0 // pred_fallthru
    _
  // Predicated region
  $region30: #{tpu_custom_call.1} parent=0 // pred_check
    _
  $region31: #{tpu_custom_call.1} parent=0 // pred_check_branch
    %132 = sbr.rel (0) target = $region33
  $region32: #{tpu_custom_call.1} parent=0 // pred_region
    _
  $region33: #{tpu_custom_call.1} parent=0 // pred_fallthru
    _

</llo_original>
